<compile_context>
chip_gen: v5e
topology: v5e:2x2
jax: 0.10.0
libtpu: 0.0.40
codegen_flags: <defaults>
</compile_context>

<pallas_src>
import functools

import jax
import jax.numpy as jnp
import numpy as np
from jax.experimental import pallas as pl
from jax.experimental.pallas import tpu as pltpu


def _dwconv_kernel(H, W, k, x_ref, wd_ref, bd_ref, wp_ref, bp_ref,
                   g_ref, b_ref, o_ref):
    """Fused depthwise conv + 1x1 conv + LayerNorm + SiLU for one image.

    Block shapes:
      x_ref : (1, C_in,  H*W)  input image, spatial flattened onto lanes
      wd_ref: (C_in, k*k)      depthwise weights
      bd_ref: (C_in, 1)        depthwise bias
      wp_ref: (C_out, C_in)    pointwise (1x1) weights
      bp_ref: (C_out, 1)       pointwise bias
      g_ref : (C_out, 1)       LayerNorm gamma
      b_ref : (C_out, 1)       LayerNorm beta
      o_ref : (1, C_out, H*W)  output (NCHW layout, spatial flattened)
    """
    HW = H * W
    r = k // 2
    x = x_ref[0]                                        # (C_in, HW) f32

    # Flat spatial position -> masks for the zero 'same' padding.
    p = jax.lax.broadcasted_iota(jnp.int32, (1, HW), 1)
    if W & (W - 1) == 0:
        w_pos = jnp.bitwise_and(p, W - 1)               # W power of two
    else:
        w_pos = jax.lax.rem(p, W)

    # ---- depthwise k x k conv (stride 1, dilation 1, zero pad k//2) ----
    # Tap (oy, ox) at flat position p is x[p + oy*W + ox]; realized as a lane
    # rotation (XLU) with boundary positions masked to zero (the padding).
    acc = jnp.zeros(x.shape, jnp.float32)
    for ky in range(k):
        oy = ky - r
        for kx in range(k):
            ox = kx - r
            d = oy * W + ox
            tap = x if d == 0 else pltpu.roll(x, shift=(-d) % HW, axis=1)
            conds = []
            if oy < 0:
                conds.append(p >= (-oy) * W)            # h + oy >= 0
            if oy > 0:
                conds.append(p < (H - oy) * W)          # h + oy <  H
            if ox < 0:
                conds.append(w_pos >= (-ox))            # w + ox >= 0
            if ox > 0:
                conds.append(w_pos < (W - ox))          # w + ox <  W
            if conds:
                valid = conds[0]
                for c in conds[1:]:
                    valid = jnp.logical_and(valid, c)
                tap = jnp.where(valid, tap, 0.0)
            t = ky * k + kx
            acc = acc + tap * wd_ref[:, t:t + 1]        # per-channel weight
    acc = acc + bd_ref[...]                             # depthwise bias

    # ---- pointwise 1x1 conv: (C_out, C_in) @ (C_in, HW) on the MXU ----
    z = jnp.dot(wp_ref[...], acc,
                preferred_element_type=jnp.float32) + bp_ref[...]

    # ---- LayerNorm over channels (eps=1e-6); channel axis = sublanes ----
    mean = jnp.mean(z, axis=0, keepdims=True)           # (1, HW)
    var = jnp.mean((z - mean) ** 2, axis=0, keepdims=True)
    zn = (z - mean) * jax.lax.rsqrt(var + 1e-6)
    zn = zn * g_ref[...] + b_ref[...]

    # ---- SiLU: x * sigmoid(x) = x / (1 + exp(-x)) ----
    o_ref[0] = zn / (1.0 + jnp.exp(-zn))


def dwconv_forward(x, depth_w, depth_b, point_w, point_b, ln_gamma, ln_beta):
    """x: (B, C_in, H, W) f32 (NCHW, torch layout).

    depth_w: (C_in, 1, k, k), depth_b: (C_in,)
    point_w: (C_out, C_in, 1, 1), point_b: (C_out,)
    ln_gamma, ln_beta: (C_out,)
    Returns: (B, C_out, H, W) f32.
    """
    B, C_in, H, W = x.shape
    k = depth_w.shape[-1]
    C_out = point_w.shape[0]
    HW = H * W
    # TODO(synk): stride>1 / dilation>1 Conv2d variants of the module are not
    # implemented (module defaults k=3, stride=1, dilation=1, pad=k//2 are).
    # TODO(synk): for large H*W, add a spatial-tile grid axis (with a +/-W halo
    # for the depthwise taps) and cap the tile for v7x's 64 MiB VMEM.

    x_flat = x.reshape(B, C_in, HW)                     # free metadata reshape
    wd = depth_w.reshape(C_in, k * k)
    wp = point_w.reshape(C_out, C_in)

    kernel = functools.partial(_dwconv_kernel, H, W, k)
    out = pl.pallas_call(
        kernel,
        out_shape=jax.ShapeDtypeStruct((B, C_out, HW), jnp.float32),
        grid=(B,),
        in_specs=[
            pl.BlockSpec((1, C_in, HW), lambda b: (b, 0, 0)),
            pl.BlockSpec((C_in, k * k), lambda b: (0, 0)),   # resident weights
            pl.BlockSpec((C_in, 1), lambda b: (0, 0)),
            pl.BlockSpec((C_out, C_in), lambda b: (0, 0)),
            pl.BlockSpec((C_out, 1), lambda b: (0, 0)),
            pl.BlockSpec((C_out, 1), lambda b: (0, 0)),
            pl.BlockSpec((C_out, 1), lambda b: (0, 0)),
        ],
        out_specs=pl.BlockSpec((1, C_out, HW), lambda b: (b, 0, 0)),
        compiler_params=pltpu.CompilerParams(
            dimension_semantics=("parallel",)),
    )(x_flat, wd, depth_b.reshape(C_in, 1), wp, point_b.reshape(C_out, 1),
      ln_gamma.reshape(C_out, 1), ln_beta.reshape(C_out, 1))
    return out.reshape(B, C_out, H, W)


def dwconv_reference(x, depth_w, depth_b, point_w, point_b, ln_gamma, ln_beta):
    """Pure-JAX mirror of the PyTorch forward, for verification."""
    B, C, H, W = x.shape
    k = depth_w.shape[-1]
    r = k // 2
    xp = jnp.pad(x, ((0, 0), (0, 0), (r, r), (r, r)))
    y = jnp.zeros_like(x)
    for ky in range(k):
        for kx in range(k):
            w_tap = depth_w[:, 0, ky, kx][None, :, None, None]
            y = y + xp[:, :, ky:ky + H, kx:kx + W] * w_tap
    y = y + depth_b[None, :, None, None]
    z = jnp.einsum("oc,bchw->bohw", point_w[:, :, 0, 0], y,
                   precision=jax.lax.Precision.HIGHEST)
    z = z + point_b[None, :, None, None]
    mean = z.mean(axis=1, keepdims=True)
    var = ((z - mean) ** 2).mean(axis=1, keepdims=True)
    zn = (z - mean) / jnp.sqrt(var + 1e-6)
    zn = zn * ln_gamma[None, :, None, None] + ln_beta[None, :, None, None]
    return zn * jax.nn.sigmoid(zn)


if __name__ == "__main__":
    key = jax.random.PRNGKey(0)
    B, C_in, C_out, H, W = 2, 16, 32, 16, 16
    k = 3

    ks = jax.random.split(key, 7)
    x = jax.random.normal(ks[0], (B, C_in, H, W), dtype=jnp.float32)
    depth_w = 0.2 * jax.random.normal(ks[1], (C_in, 1, k, k), dtype=jnp.float32)
    depth_b = 0.1 * jax.random.normal(ks[2], (C_in,), dtype=jnp.float32)
    point_w = jax.random.normal(
        ks[3], (C_out, C_in, 1, 1), dtype=jnp.float32) / np.sqrt(C_in)
    point_b = 0.1 * jax.random.normal(ks[4], (C_out,), dtype=jnp.float32)
    ln_gamma = 1.0 + 0.1 * jax.random.normal(ks[5], (C_out,), dtype=jnp.float32)
    ln_beta = 0.1 * jax.random.normal(ks[6], (C_out,), dtype=jnp.float32)

    out = jax.block_until_ready(
        jax.jit(dwconv_forward)(x, depth_w, depth_b, point_w, point_b,
                                ln_gamma, ln_beta))
    ref = dwconv_reference(x, depth_w, depth_b, point_w, point_b,
                           ln_gamma, ln_beta)

    assert out.shape == (B, C_out, H, W)
    np.testing.assert_allclose(np.asarray(out), np.asarray(ref),
                               rtol=5e-4, atol=5e-4)
    print("KERNEL_OK")
</pallas_src>

<mosaic_0001>
module attributes {stable_mosaic.version = 11 : i64} {
  func.func @_dwconv_kernel(%arg0: i32, %arg1: memref<1x16x256xf32, #tpu.memory_space<vmem>>, %arg2: memref<16x9xf32, #tpu.memory_space<vmem>>, %arg3: memref<16x1xf32, #tpu.memory_space<vmem>>, %arg4: memref<32x16xf32, #tpu.memory_space<vmem>>, %arg5: memref<32x1xf32, #tpu.memory_space<vmem>>, %arg6: memref<32x1xf32, #tpu.memory_space<vmem>>, %arg7: memref<32x1xf32, #tpu.memory_space<vmem>>, %arg8: memref<1x32x256xf32, #tpu.memory_space<vmem>>) attributes {dimension_semantics = [#tpu.dimension_semantics<parallel>], iteration_bounds = array<i64: 2>, scalar_prefetch = 0 : i64, scratch_operands = 0 : i64, tpu.core_type = #tpu.core_type<tc>, window_params = [{transform_indices = @transform_0, window_bounds = array<i64: 1, 16, 256>}, {pipeline_mode = #tpu.pipeline_mode<synchronous>, transform_indices = @transform_1, window_bounds = array<i64: 16, 9>}, {pipeline_mode = #tpu.pipeline_mode<synchronous>, transform_indices = @transform_2, window_bounds = array<i64: 16, 1>}, {pipeline_mode = #tpu.pipeline_mode<synchronous>, transform_indices = @transform_3, window_bounds = array<i64: 32, 16>}, {pipeline_mode = #tpu.pipeline_mode<synchronous>, transform_indices = @transform_4, window_bounds = array<i64: 32, 1>}, {pipeline_mode = #tpu.pipeline_mode<synchronous>, transform_indices = @transform_5, window_bounds = array<i64: 32, 1>}, {pipeline_mode = #tpu.pipeline_mode<synchronous>, transform_indices = @transform_6, window_bounds = array<i64: 32, 1>}, {transform_indices = @transform_7, window_bounds = array<i64: 1, 32, 256>}]} {
    %c0 = arith.constant 0 : index
    %c0_0 = arith.constant 0 : index
    %c0_1 = arith.constant 0 : index
    %0 = vector.load %arg1[%c0, %c0_0, %c0_1] : memref<1x16x256xf32, #tpu.memory_space<vmem>>, vector<1x16x256xf32>
    %1 = vector.shape_cast %0 : vector<1x16x256xf32> to vector<16x256xf32>
    %2 = tpu.iota {dimensions = array<i32: 1>} : vector<1x256xi32>
    %c15_i32 = arith.constant 15 : i32
    %3 = vector.broadcast %c15_i32 : i32 to vector<1x256xi32>
    %4 = arith.andi %2, %3 : vector<1x256xi32>
    %cst = arith.constant 0.000000e+00 : f32
    %5 = vector.broadcast %cst : f32 to vector<16x256xf32>
    %c17_i32 = arith.constant 17 : i32
    %6 = tpu.dynamic_rotate %1 by %c17_i32 dim 1 : vector<16x256xf32>, i32 -> vector<16x256xf32>
    %c16_i32 = arith.constant 16 : i32
    %7 = vector.broadcast %c16_i32 : i32 to vector<1x256xi32>
    %8 = arith.cmpi sge, %2, %7 : vector<1x256xi32>
    %c1_i32 = arith.constant 1 : i32
    %9 = vector.broadcast %c1_i32 : i32 to vector<1x256xi32>
    %10 = arith.cmpi sge, %4, %9 : vector<1x256xi32>
    %11 = arith.andi %8, %10 : vector<1x256xi1>
    %cst_2 = arith.constant 0.000000e+00 : f32
    %12 = vector.shape_cast %11 : vector<1x256xi1> to vector<1x256xi1>
    %13 = vector.broadcast %12 : vector<1x256xi1> to vector<16x256xi1>
    %14 = vector.broadcast %cst_2 : f32 to vector<16x256xf32>
    %15 = arith.select %13, %6, %14 : vector<16x256xi1>, vector<16x256xf32>
    %c0_3 = arith.constant 0 : index
    %c0_4 = arith.constant 0 : index
    %16 = vector.load %arg2[%c0_3, %c0_4] : memref<16x9xf32, #tpu.memory_space<vmem>>, vector<16x1xf32>
    %17 = vector.broadcast %16 : vector<16x1xf32> to vector<16x256xf32>
    %18 = arith.mulf %15, %17 : vector<16x256xf32>
    %19 = arith.addf %5, %18 : vector<16x256xf32>
    %c16_i32_5 = arith.constant 16 : i32
    %20 = tpu.dynamic_rotate %1 by %c16_i32_5 dim 1 : vector<16x256xf32>, i32 -> vector<16x256xf32>
    %c16_i32_6 = arith.constant 16 : i32
    %21 = vector.broadcast %c16_i32_6 : i32 to vector<1x256xi32>
    %22 = arith.cmpi sge, %2, %21 : vector<1x256xi32>
    %cst_7 = arith.constant 0.000000e+00 : f32
    %23 = vector.shape_cast %22 : vector<1x256xi1> to vector<1x256xi1>
    %24 = vector.broadcast %23 : vector<1x256xi1> to vector<16x256xi1>
    %25 = vector.broadcast %cst_7 : f32 to vector<16x256xf32>
    %26 = arith.select %24, %20, %25 : vector<16x256xi1>, vector<16x256xf32>
    %c0_8 = arith.constant 0 : index
    %c1 = arith.constant 1 : index
    %27 = vector.load %arg2[%c0_8, %c1] : memref<16x9xf32, #tpu.memory_space<vmem>>, vector<16x1xf32>
    %28 = vector.broadcast %27 : vector<16x1xf32> to vector<16x256xf32>
    %29 = arith.mulf %26, %28 : vector<16x256xf32>
    %30 = arith.addf %19, %29 : vector<16x256xf32>
    %c15_i32_9 = arith.constant 15 : i32
    %31 = tpu.dynamic_rotate %1 by %c15_i32_9 dim 1 : vector<16x256xf32>, i32 -> vector<16x256xf32>
    %c16_i32_10 = arith.constant 16 : i32
    %32 = vector.broadcast %c16_i32_10 : i32 to vector<1x256xi32>
    %33 = arith.cmpi sge, %2, %32 : vector<1x256xi32>
    %c15_i32_11 = arith.constant 15 : i32
    %34 = vector.broadcast %c15_i32_11 : i32 to vector<1x256xi32>
    %35 = arith.cmpi slt, %4, %34 : vector<1x256xi32>
    %36 = arith.andi %33, %35 : vector<1x256xi1>
    %cst_12 = arith.constant 0.000000e+00 : f32
    %37 = vector.shape_cast %36 : vector<1x256xi1> to vector<1x256xi1>
    %38 = vector.broadcast %37 : vector<1x256xi1> to vector<16x256xi1>
    %39 = vector.broadcast %cst_12 : f32 to vector<16x256xf32>
    %40 = arith.select %38, %31, %39 : vector<16x256xi1>, vector<16x256xf32>
    %c0_13 = arith.constant 0 : index
    %c2 = arith.constant 2 : index
    %41 = vector.load %arg2[%c0_13, %c2] : memref<16x9xf32, #tpu.memory_space<vmem>>, vector<16x1xf32>
    %42 = vector.broadcast %41 : vector<16x1xf32> to vector<16x256xf32>
    %43 = arith.mulf %40, %42 : vector<16x256xf32>
    %44 = arith.addf %30, %43 : vector<16x256xf32>
    %c1_i32_14 = arith.constant 1 : i32
    %45 = tpu.dynamic_rotate %1 by %c1_i32_14 dim 1 : vector<16x256xf32>, i32 -> vector<16x256xf32>
    %c1_i32_15 = arith.constant 1 : i32
    %46 = vector.broadcast %c1_i32_15 : i32 to vector<1x256xi32>
    %47 = arith.cmpi sge, %4, %46 : vector<1x256xi32>
    %cst_16 = arith.constant 0.000000e+00 : f32
    %48 = vector.shape_cast %47 : vector<1x256xi1> to vector<1x256xi1>
    %49 = vector.broadcast %48 : vector<1x256xi1> to vector<16x256xi1>
    %50 = vector.broadcast %cst_16 : f32 to vector<16x256xf32>
    %51 = arith.select %49, %45, %50 : vector<16x256xi1>, vector<16x256xf32>
    %c0_17 = arith.constant 0 : index
    %c3 = arith.constant 3 : index
    %52 = vector.load %arg2[%c0_17, %c3] : memref<16x9xf32, #tpu.memory_space<vmem>>, vector<16x1xf32>
    %53 = vector.broadcast %52 : vector<16x1xf32> to vector<16x256xf32>
    %54 = arith.mulf %51, %53 : vector<16x256xf32>
    %55 = arith.addf %44, %54 : vector<16x256xf32>
    %c0_18 = arith.constant 0 : index
    %c4 = arith.constant 4 : index
    %56 = vector.load %arg2[%c0_18, %c4] : memref<16x9xf32, #tpu.memory_space<vmem>>, vector<16x1xf32>
    %57 = vector.broadcast %56 : vector<16x1xf32> to vector<16x256xf32>
    %58 = arith.mulf %1, %57 : vector<16x256xf32>
    %59 = arith.addf %55, %58 : vector<16x256xf32>
    %c255_i32 = arith.constant 255 : i32
    %60 = tpu.dynamic_rotate %1 by %c255_i32 dim 1 : vector<16x256xf32>, i32 -> vector<16x256xf32>
    %c15_i32_19 = arith.constant 15 : i32
    %61 = vector.broadcast %c15_i32_19 : i32 to vector<1x256xi32>
    %62 = arith.cmpi slt, %4, %61 : vector<1x256xi32>
    %cst_20 = arith.constant 0.000000e+00 : f32
    %63 = vector.shape_cast %62 : vector<1x256xi1> to vector<1x256xi1>
    %64 = vector.broadcast %63 : vector<1x256xi1> to vector<16x256xi1>
    %65 = vector.broadcast %cst_20 : f32 to vector<16x256xf32>
    %66 = arith.select %64, %60, %65 : vector<16x256xi1>, vector<16x256xf32>
    %c0_21 = arith.constant 0 : index
    %c5 = arith.constant 5 : index
    %67 = vector.load %arg2[%c0_21, %c5] : memref<16x9xf32, #tpu.memory_space<vmem>>, vector<16x1xf32>
    %68 = vector.broadcast %67 : vector<16x1xf32> to vector<16x256xf32>
    %69 = arith.mulf %66, %68 : vector<16x256xf32>
    %70 = arith.addf %59, %69 : vector<16x256xf32>
    %c241_i32 = arith.constant 241 : i32
    %71 = tpu.dynamic_rotate %1 by %c241_i32 dim 1 : vector<16x256xf32>, i32 -> vector<16x256xf32>
    %c240_i32 = arith.constant 240 : i32
    %72 = vector.broadcast %c240_i32 : i32 to vector<1x256xi32>
    %73 = arith.cmpi slt, %2, %72 : vector<1x256xi32>
    %c1_i32_22 = arith.constant 1 : i32
    %74 = vector.broadcast %c1_i32_22 : i32 to vector<1x256xi32>
    %75 = arith.cmpi sge, %4, %74 : vector<1x256xi32>
    %76 = arith.andi %73, %75 : vector<1x256xi1>
    %cst_23 = arith.constant 0.000000e+00 : f32
    %77 = vector.shape_cast %76 : vector<1x256xi1> to vector<1x256xi1>
    %78 = vector.broadcast %77 : vector<1x256xi1> to vector<16x256xi1>
    %79 = vector.broadcast %cst_23 : f32 to vector<16x256xf32>
    %80 = arith.select %78, %71, %79 : vector<16x256xi1>, vector<16x256xf32>
    %c0_24 = arith.constant 0 : index
    %c6 = arith.constant 6 : index
    %81 = vector.load %arg2[%c0_24, %c6] : memref<16x9xf32, #tpu.memory_space<vmem>>, vector<16x1xf32>
    %82 = vector.broadcast %81 : vector<16x1xf32> to vector<16x256xf32>
    %83 = arith.mulf %80, %82 : vector<16x256xf32>
    %84 = arith.addf %70, %83 : vector<16x256xf32>
    %c240_i32_25 = arith.constant 240 : i32
    %85 = tpu.dynamic_rotate %1 by %c240_i32_25 dim 1 : vector<16x256xf32>, i32 -> vector<16x256xf32>
    %c240_i32_26 = arith.constant 240 : i32
    %86 = vector.broadcast %c240_i32_26 : i32 to vector<1x256xi32>
    %87 = arith.cmpi slt, %2, %86 : vector<1x256xi32>
    %cst_27 = arith.constant 0.000000e+00 : f32
    %88 = vector.shape_cast %87 : vector<1x256xi1> to vector<1x256xi1>
    %89 = vector.broadcast %88 : vector<1x256xi1> to vector<16x256xi1>
    %90 = vector.broadcast %cst_27 : f32 to vector<16x256xf32>
    %91 = arith.select %89, %85, %90 : vector<16x256xi1>, vector<16x256xf32>
    %c0_28 = arith.constant 0 : index
    %c7 = arith.constant 7 : index
    %92 = vector.load %arg2[%c0_28, %c7] : memref<16x9xf32, #tpu.memory_space<vmem>>, vector<16x1xf32>
    %93 = vector.broadcast %92 : vector<16x1xf32> to vector<16x256xf32>
    %94 = arith.mulf %91, %93 : vector<16x256xf32>
    %95 = arith.addf %84, %94 : vector<16x256xf32>
    %c239_i32 = arith.constant 239 : i32
    %96 = tpu.dynamic_rotate %1 by %c239_i32 dim 1 : vector<16x256xf32>, i32 -> vector<16x256xf32>
    %c240_i32_29 = arith.constant 240 : i32
    %97 = vector.broadcast %c240_i32_29 : i32 to vector<1x256xi32>
    %98 = arith.cmpi slt, %2, %97 : vector<1x256xi32>
    %c15_i32_30 = arith.constant 15 : i32
    %99 = vector.broadcast %c15_i32_30 : i32 to vector<1x256xi32>
    %100 = arith.cmpi slt, %4, %99 : vector<1x256xi32>
    %101 = arith.andi %98, %100 : vector<1x256xi1>
    %cst_31 = arith.constant 0.000000e+00 : f32
    %102 = vector.shape_cast %101 : vector<1x256xi1> to vector<1x256xi1>
    %103 = vector.broadcast %102 : vector<1x256xi1> to vector<16x256xi1>
    %104 = vector.broadcast %cst_31 : f32 to vector<16x256xf32>
    %105 = arith.select %103, %96, %104 : vector<16x256xi1>, vector<16x256xf32>
    %c0_32 = arith.constant 0 : index
    %c8 = arith.constant 8 : index
    %106 = vector.load %arg2[%c0_32, %c8] : memref<16x9xf32, #tpu.memory_space<vmem>>, vector<16x1xf32>
    %107 = vector.broadcast %106 : vector<16x1xf32> to vector<16x256xf32>
    %108 = arith.mulf %105, %107 : vector<16x256xf32>
    %109 = arith.addf %95, %108 : vector<16x256xf32>
    %c0_33 = arith.constant 0 : index
    %c0_34 = arith.constant 0 : index
    %110 = vector.load %arg3[%c0_33, %c0_34] : memref<16x1xf32, #tpu.memory_space<vmem>>, vector<16x1xf32>
    %111 = vector.broadcast %110 : vector<16x1xf32> to vector<16x256xf32>
    %112 = arith.addf %109, %111 : vector<16x256xf32>
    %c0_35 = arith.constant 0 : index
    %c0_36 = arith.constant 0 : index
    %113 = vector.load %arg4[%c0_35, %c0_36] : memref<32x16xf32, #tpu.memory_space<vmem>>, vector<32x16xf32>
    %cst_37 = arith.constant dense<0.000000e+00> : vector<32x256xf32>
    %114 = tpu.matmul %113, %112, %cst_37 {dimension_numbers = #tpu.dot_dimension_numbers<[1], [0], [0], [1], [0, 0, 1, 1], [], []>} : vector<32x16xf32>, vector<16x256xf32>, vector<32x256xf32> -> vector<32x256xf32>
    %c0_38 = arith.constant 0 : index
    %c0_39 = arith.constant 0 : index
    %115 = vector.load %arg5[%c0_38, %c0_39] : memref<32x1xf32, #tpu.memory_space<vmem>>, vector<32x1xf32>
    %116 = vector.broadcast %115 : vector<32x1xf32> to vector<32x256xf32>
    %117 = arith.addf %114, %116 : vector<32x256xf32>
    %cst_40 = arith.constant dense<0.000000e+00> : vector<256xf32>
    %118 = vector.multi_reduction <add>, %117, %cst_40 [0] : vector<32x256xf32> to vector<256xf32>
    %119 = vector.shape_cast %118 : vector<256xf32> to vector<1x256xf32>
    %cst_41 = arith.constant 3.200000e+01 : f32
    %120 = vector.broadcast %cst_41 : f32 to vector<1x256xf32>
    %121 = arith.divf %119, %120 : vector<1x256xf32>
    %122 = vector.broadcast %121 : vector<1x256xf32> to vector<32x256xf32>
    %123 = arith.subf %117, %122 : vector<32x256xf32>
    %124 = arith.mulf %123, %123 : vector<32x256xf32>
    %cst_42 = arith.constant dense<0.000000e+00> : vector<256xf32>
    %125 = vector.multi_reduction <add>, %124, %cst_42 [0] : vector<32x256xf32> to vector<256xf32>
    %126 = vector.shape_cast %125 : vector<256xf32> to vector<1x256xf32>
    %cst_43 = arith.constant 3.200000e+01 : f32
    %127 = vector.broadcast %cst_43 : f32 to vector<1x256xf32>
    %128 = arith.divf %126, %127 : vector<1x256xf32>
    %129 = vector.broadcast %121 : vector<1x256xf32> to vector<32x256xf32>
    %130 = arith.subf %117, %129 : vector<32x256xf32>
    %cst_44 = arith.constant 9.99999997E-7 : f32
    %131 = vector.broadcast %cst_44 : f32 to vector<1x256xf32>
    %132 = arith.addf %128, %131 : vector<1x256xf32>
    %133 = math.rsqrt %132 : vector<1x256xf32>
    %134 = vector.broadcast %133 : vector<1x256xf32> to vector<32x256xf32>
    %135 = arith.mulf %130, %134 : vector<32x256xf32>
    %c0_45 = arith.constant 0 : index
    %c0_46 = arith.constant 0 : index
    %136 = vector.load %arg6[%c0_45, %c0_46] : memref<32x1xf32, #tpu.memory_space<vmem>>, vector<32x1xf32>
    %137 = vector.broadcast %136 : vector<32x1xf32> to vector<32x256xf32>
    %138 = arith.mulf %135, %137 : vector<32x256xf32>
    %c0_47 = arith.constant 0 : index
    %c0_48 = arith.constant 0 : index
    %139 = vector.load %arg7[%c0_47, %c0_48] : memref<32x1xf32, #tpu.memory_space<vmem>>, vector<32x1xf32>
    %140 = vector.broadcast %139 : vector<32x1xf32> to vector<32x256xf32>
    %141 = arith.addf %138, %140 : vector<32x256xf32>
    %cst_49 = arith.constant 0.000000e+00 : f32
    %142 = vector.broadcast %cst_49 : f32 to vector<32x256xf32>
    %143 = arith.subf %142, %141 : vector<32x256xf32>
    %144 = math.exp %143 : vector<32x256xf32>
    %cst_50 = arith.constant 1.000000e+00 : f32
    %145 = vector.broadcast %cst_50 : f32 to vector<32x256xf32>
    %146 = arith.addf %145, %144 : vector<32x256xf32>
    %147 = arith.divf %141, %146 : vector<32x256xf32>
    %c0_51 = arith.constant 0 : index
    %c0_52 = arith.constant 0 : index
    %c0_53 = arith.constant 0 : index
    %148 = vector.load %arg8[%c0_51, %c0_52, %c0_53] : memref<1x32x256xf32, #tpu.memory_space<vmem>>, vector<1x32x256xf32>
    %149 = vector.shape_cast %148 : vector<1x32x256xf32> to vector<32x256xf32>
    %150 = vector.shape_cast %147 : vector<32x256xf32> to vector<1x32x256xf32>
    tpu.vector_store %arg8[%c0_51, %c0_52, %c0_53], %150 {strides = array<i32>} : memref<1x32x256xf32, #tpu.memory_space<vmem>>, vector<1x32x256xf32>,
    return
  }
  func.func @transform_0(%arg0: i32) -> (i32, i32, i32) {
    %c0_i32 = arith.constant 0 : i32
    %c0_i32_0 = arith.constant 0 : i32
    %c0_i32_1 = arith.constant 0 : i32
    return %arg0, %c0_i32, %c0_i32_0 : i32, i32, i32
  }
  func.func @transform_1(%arg0: i32) -> (i32, i32) {
    %c0_i32 = arith.constant 0 : i32
    %c0_i32_0 = arith.constant 0 : i32
    %c0_i32_1 = arith.constant 0 : i32
    return %c0_i32, %c0_i32_0 : i32, i32
  }
  func.func @transform_2(%arg0: i32) -> (i32, i32) {
    %c0_i32 = arith.constant 0 : i32
    %c0_i32_0 = arith.constant 0 : i32
    %c0_i32_1 = arith.constant 0 : i32
    return %c0_i32, %c0_i32_0 : i32, i32
  }
  func.func @transform_3(%arg0: i32) -> (i32, i32) {
    %c0_i32 = arith.constant 0 : i32
    %c0_i32_0 = arith.constant 0 : i32
    %c0_i32_1 = arith.constant 0 : i32
    return %c0_i32, %c0_i32_0 : i32, i32
  }
  func.func @transform_4(%arg0: i32) -> (i32, i32) {
    %c0_i32 = arith.constant 0 : i32
    %c0_i32_0 = arith.constant 0 : i32
    %c0_i32_1 = arith.constant 0 : i32
    return %c0_i32, %c0_i32_0 : i32, i32
  }
  func.func @transform_5(%arg0: i32) -> (i32, i32) {
    %c0_i32 = arith.constant 0 : i32
    %c0_i32_0 = arith.constant 0 : i32
    %c0_i32_1 = arith.constant 0 : i32
    return %c0_i32, %c0_i32_0 : i32, i32
  }
  func.func @transform_6(%arg0: i32) -> (i32, i32) {
    %c0_i32 = arith.constant 0 : i32
    %c0_i32_0 = arith.constant 0 : i32
    %c0_i32_1 = arith.constant 0 : i32
    return %c0_i32, %c0_i32_0 : i32, i32
  }
  func.func @transform_7(%arg0: i32) -> (i32, i32, i32) {
    %c0_i32 = arith.constant 0 : i32
    %c0_i32_0 = arith.constant 0 : i32
    %c0_i32_1 = arith.constant 0 : i32
    return %arg0, %c0_i32, %c0_i32_0 : i32, i32, i32
  }
}

</mosaic_0001>

<llo_original>
// kernel: dwconv_forward.1
$region0: #{dwconv_forward.1}
  #allocation0 [shape = 'u32[]', space=smem, size = 0x4, offset = 0x4, fixed_abs, tag = 'smem constant byte address 0x4 - core index']
  #allocation1 [shape = 'u32[72,128]{1,0:T(1,128)}', space=vmem, size = 0x9000, scoped, tag = 'internal scratch']
  %s0 = inlined_call_operand.vmem [shape: f32[2,16,256], index: 0, kind: input, shape index: {}]
  %s1 = inlined_call_operand.vmem [shape: f32[16,9], index: 1, kind: input, shape index: {}]
  %s2 = inlined_call_operand.vmem [shape: f32[16,1], index: 2, kind: input, shape index: {}]
  %s3 = inlined_call_operand.vmem [shape: f32[32,16], index: 3, kind: input, shape index: {}]
  %s4 = inlined_call_operand.vmem [shape: f32[32,1], index: 4, kind: input, shape index: {}]
  %s5 = inlined_call_operand.vmem [shape: f32[32,1], index: 5, kind: input, shape index: {}]
  %s6 = inlined_call_operand.vmem [shape: f32[32,1], index: 6, kind: input, shape index: {}]
  %s7 = inlined_call_operand.vmem [shape: f32[2,32,256], index: 7, kind: output, shape index: {}]
  %s8 = sld [smem:[#allocation0]]
  $region61: #{dwconv_forward.1} parent=0
    _
  %s10 = ssub.s32 1, %s8
  %s11 = scalar_select 0, %s10, %s8
  loop: start=0, step=1, limit=4
  $region2: #{dwconv_forward.1} parent=0 // loop_pre_header
    _
  $region3: #{dwconv_forward.1} parent=0 // loop_header
    %s13 = sphi 0, %s17
    %p14 = scmp.ge.s32.totalorder %s13, 4
    %s23 = sphi 0, %s25
    %s26 = sphi 0, %s23
    %s27 = sphi 0, %s26
    %s43 = sphi 0, %s27
    %s47 = sphi 0, %s47
    %s49 = sphi 0, %s47
    %s50 = sphi 0, %s49
    %s64 = sphi 0, %s50
    %s68 = sphi 0, %s68
    %s70 = sphi 0, %s68
    %s71 = sphi 0, %s70
    %s85 = sphi 0, %s71
    %s89 = sphi 0, %s89
    %s91 = sphi 0, %s89
    %s92 = sphi 0, %s91
    %s106 = sphi 0, %s92
    %s110 = sphi 0, %s110
    %s112 = sphi 0, %s110
    %s113 = sphi 0, %s112
    %s127 = sphi 0, %s113
    %s131 = sphi 0, %s131
    %s133 = sphi 0, %s131
    %s134 = sphi 0, %s133
    %s148 = sphi 0, %s134
    %s152 = sphi 0, %s152
    %s154 = sphi 0, %s152
    %s155 = sphi 0, %s154
    %s169 = sphi 0, %s155
    %s175 = sphi 0, %s177
    %s178 = sphi 0, %s175
    %s179 = sphi 0, %s178
    %s195 = sphi 0, %s179
  $region4: #{dwconv_forward.1} parent=0 // loop_header_branch
    %16 = sbr.rel (%p14) target = $region8
  $region5: #{dwconv_forward.1} parent=0 // loop_body
    %s18 = ssub.s32 %s13, 1
    %s19 = ssub.s32 %s13, 2
    %s20 = sadd.s32 %s13, 1
    %s21 = ssub.s32 %s13, %s20
    %p22 = scmp.eq.s32.totalorder %s21, 0
    %s24 = sadd.s32 %s23, 1
    %s25 = scalar_select %p22, %s23, %s24
    %p28 = pneg %p22
    %p29 = scmp.eq.s32.totalorder %s13, 1
    %p30 = por %p28, %p29
    %p31 = scmp.ne.s32.totalorder %s23, %s26
    %p32 = scmp.eq.s32.totalorder %s13, 0
    %p33 = por %p31, %p32
    %p34 = scmp.ne.s32.totalorder %s23, %s26
    %p35 = scmp.eq.s32.totalorder %s18, 1
    %p36 = por %p34, %p35
    %p37 = scmp.ne.s32.totalorder %s26, %s27
    %p38 = scmp.eq.s32.totalorder %s18, 0
    %p39 = por %p37, %p38
    %p40 = scmp.ne.s32.totalorder %s26, %s27
    %p41 = scmp.eq.s32.totalorder %s19, 1
    %p42 = por %p40, %p41
    %p44 = scmp.ne.s32.totalorder %s27, %s43
    %p45 = scmp.eq.s32.totalorder %s19, 0
    %p46 = por %p44, %p45
    %s48 = sadd.s32 %s47, 1
    %p51 = scmp.eq.s32.totalorder %s13, 1
    %p52 = scmp.ne.s32.totalorder %s47, %s49
    %p53 = scmp.eq.s32.totalorder %s13, 0
    %p54 = por %p52, %p53
    %p55 = scmp.ne.s32.totalorder %s47, %s49
    %p56 = scmp.eq.s32.totalorder %s18, 1
    %p57 = por %p55, %p56
    %p58 = scmp.ne.s32.totalorder %s49, %s50
    %p59 = scmp.eq.s32.totalorder %s18, 0
    %p60 = por %p58, %p59
    %p61 = scmp.ne.s32.totalorder %s49, %s50
    %p62 = scmp.eq.s32.totalorder %s19, 1
    %p63 = por %p61, %p62
    %p65 = scmp.ne.s32.totalorder %s50, %s64
    %p66 = scmp.eq.s32.totalorder %s19, 0
    %p67 = por %p65, %p66
    %s69 = sadd.s32 %s68, 1
    %p72 = scmp.eq.s32.totalorder %s13, 1
    %p73 = scmp.ne.s32.totalorder %s68, %s70
    %p74 = scmp.eq.s32.totalorder %s13, 0
    %p75 = por %p73, %p74
    %p76 = scmp.ne.s32.totalorder %s68, %s70
    %p77 = scmp.eq.s32.totalorder %s18, 1
    %p78 = por %p76, %p77
    %p79 = scmp.ne.s32.totalorder %s70, %s71
    %p80 = scmp.eq.s32.totalorder %s18, 0
    %p81 = por %p79, %p80
    %p82 = scmp.ne.s32.totalorder %s70, %s71
    %p83 = scmp.eq.s32.totalorder %s19, 1
    %p84 = por %p82, %p83
    %p86 = scmp.ne.s32.totalorder %s71, %s85
    %p87 = scmp.eq.s32.totalorder %s19, 0
    %p88 = por %p86, %p87
    %s90 = sadd.s32 %s89, 1
    %p93 = scmp.eq.s32.totalorder %s13, 1
    %p94 = scmp.ne.s32.totalorder %s89, %s91
    %p95 = scmp.eq.s32.totalorder %s13, 0
    %p96 = por %p94, %p95
    %p97 = scmp.ne.s32.totalorder %s89, %s91
    %p98 = scmp.eq.s32.totalorder %s18, 1
    %p99 = por %p97, %p98
    %p100 = scmp.ne.s32.totalorder %s91, %s92
    %p101 = scmp.eq.s32.totalorder %s18, 0
    %p102 = por %p100, %p101
    %p103 = scmp.ne.s32.totalorder %s91, %s92
    %p104 = scmp.eq.s32.totalorder %s19, 1
    %p105 = por %p103, %p104
    %p107 = scmp.ne.s32.totalorder %s92, %s106
    %p108 = scmp.eq.s32.totalorder %s19, 0
    %p109 = por %p107, %p108
    %s111 = sadd.s32 %s110, 1
    %p114 = scmp.eq.s32.totalorder %s13, 1
    %p115 = scmp.ne.s32.totalorder %s110, %s112
    %p116 = scmp.eq.s32.totalorder %s13, 0
    %p117 = por %p115, %p116
    %p118 = scmp.ne.s32.totalorder %s110, %s112
    %p119 = scmp.eq.s32.totalorder %s18, 1
    %p120 = por %p118, %p119
    %p121 = scmp.ne.s32.totalorder %s112, %s113
    %p122 = scmp.eq.s32.totalorder %s18, 0
    %p123 = por %p121, %p122
    %p124 = scmp.ne.s32.totalorder %s112, %s113
    %p125 = scmp.eq.s32.totalorder %s19, 1
    %p126 = por %p124, %p125
    %p128 = scmp.ne.s32.totalorder %s113, %s127
    %p129 = scmp.eq.s32.totalorder %s19, 0
    %p130 = por %p128, %p129
    %s132 = sadd.s32 %s131, 1
    %p135 = scmp.eq.s32.totalorder %s13, 1
    %p136 = scmp.ne.s32.totalorder %s131, %s133
    %p137 = scmp.eq.s32.totalorder %s13, 0
    %p138 = por %p136, %p137
    %p139 = scmp.ne.s32.totalorder %s131, %s133
    %p140 = scmp.eq.s32.totalorder %s18, 1
    %p141 = por %p139, %p140
    %p142 = scmp.ne.s32.totalorder %s133, %s134
    %p143 = scmp.eq.s32.totalorder %s18, 0
    %p144 = por %p142, %p143
    %p145 = scmp.ne.s32.totalorder %s133, %s134
    %p146 = scmp.eq.s32.totalorder %s19, 1
    %p147 = por %p145, %p146
    %p149 = scmp.ne.s32.totalorder %s134, %s148
    %p150 = scmp.eq.s32.totalorder %s19, 0
    %p151 = por %p149, %p150
    %s153 = sadd.s32 %s152, 1
    %p156 = scmp.eq.s32.totalorder %s13, 1
    %p157 = scmp.ne.s32.totalorder %s152, %s154
    %p158 = scmp.eq.s32.totalorder %s13, 0
    %p159 = por %p157, %p158
    %p160 = scmp.ne.s32.totalorder %s152, %s154
    %p161 = scmp.eq.s32.totalorder %s18, 1
    %p162 = por %p160, %p161
    %p163 = scmp.ne.s32.totalorder %s154, %s155
    %p164 = scmp.eq.s32.totalorder %s18, 0
    %p165 = por %p163, %p164
    %p166 = scmp.ne.s32.totalorder %s154, %s155
    %p167 = scmp.eq.s32.totalorder %s19, 1
    %p168 = por %p166, %p167
    %p170 = scmp.ne.s32.totalorder %s155, %s169
    %p171 = scmp.eq.s32.totalorder %s19, 0
    %p172 = por %p170, %p171
    %s173 = ssub.s32 %s13, %s20
    %p174 = scmp.eq.s32.totalorder %s173, 0
    %s176 = sadd.s32 %s175, 1
    %s177 = scalar_select %p174, %s175, %s176
    %p180 = pneg %p174
    %p181 = scmp.eq.s32.totalorder %s13, 1
    %p182 = por %p180, %p181
    %p183 = scmp.ne.s32.totalorder %s175, %s178
    %p184 = scmp.eq.s32.totalorder %s13, 0
    %p185 = por %p183, %p184
    %p186 = scmp.ne.s32.totalorder %s175, %s178
    %p187 = scmp.eq.s32.totalorder %s18, 1
    %p188 = por %p186, %p187
    %p189 = scmp.ne.s32.totalorder %s178, %s179
    %p190 = scmp.eq.s32.totalorder %s18, 0
    %p191 = por %p189, %p190
    %p192 = scmp.ne.s32.totalorder %s178, %s179
    %p193 = scmp.eq.s32.totalorder %s19, 1
    %p194 = por %p192, %p193
    %p196 = scmp.ne.s32.totalorder %s179, %s195
    %p197 = scmp.eq.s32.totalorder %s19, 0
    %p198 = por %p196, %p197
    %p199 = scmp.le.s32.totalorder 1, %s13
    %p200 = scmp.lt.s32.totalorder %s13, 3
    %p201 = pnand %p199, %p200
    %p202 = pneg %p201
    // Predicated region
    $region9: #{dwconv_forward.1} parent=5 // pred_check
      _
    $region10: #{dwconv_forward.1} parent=5 // pred_check_branch
      %204 = sbr.rel (%p201) target = $region12
    $region11: #{dwconv_forward.1} parent=5 // pred_region
      %s205 = ssub.s32 %s13, 1
      // Predicated region
      $region13: #{dwconv_forward.1} parent=11 // pred_check
        %p206 = pneg %p60
      $region14: #{dwconv_forward.1} parent=11 // pred_check_branch
        %208 = sbr.rel (%p206) target = $region16
      $region15: #{dwconv_forward.1} parent=11 // pred_region
        _
      $region16: #{dwconv_forward.1} parent=11 // pred_fallthru
        _
      // Predicated region
      $region17: #{dwconv_forward.1} parent=11 // pred_check
        %p209 = pneg %p81
      $region18: #{dwconv_forward.1} parent=11 // pred_check_branch
        %211 = sbr.rel (%p209) target = $region20
      $region19: #{dwconv_forward.1} parent=11 // pred_region
        _
      $region20: #{dwconv_forward.1} parent=11 // pred_fallthru
        _
      // Predicated region
      $region21: #{dwconv_forward.1} parent=11 // pred_check
        %p212 = pneg %p102
      $region22: #{dwconv_forward.1} parent=11 // pred_check_branch
        %214 = sbr.rel (%p212) target = $region24
      $region23: #{dwconv_forward.1} parent=11 // pred_region
        _
      $region24: #{dwconv_forward.1} parent=11 // pred_fallthru
        _
      // Predicated region
      $region25: #{dwconv_forward.1} parent=11 // pred_check
        %p215 = pneg %p123
      $region26: #{dwconv_forward.1} parent=11 // pred_check_branch
        %217 = sbr.rel (%p215) target = $region28
      $region27: #{dwconv_forward.1} parent=11 // pred_region
        _
      $region28: #{dwconv_forward.1} parent=11 // pred_fallthru
        _
      // Predicated region
      $region29: #{dwconv_forward.1} parent=11 // pred_check
        %p218 = pneg %p144
      $region30: #{dwconv_forward.1} parent=11 // pred_check_branch
        %220 = sbr.rel (%p218) target = $region32
      $region31: #{dwconv_forward.1} parent=11 // pred_region
        _
      $region32: #{dwconv_forward.1} parent=11 // pred_fallthru
        _
      // Predicated region
      $region33: #{dwconv_forward.1} parent=11 // pred_check
        %p221 = pneg %p165
      $region34: #{dwconv_forward.1} parent=11 // pred_check_branch
        %223 = sbr.rel (%p221) target = $region36
      $region35: #{dwconv_forward.1} parent=11 // pred_region
        _
      $region36: #{dwconv_forward.1} parent=11 // pred_fallthru
        _
    $region12: #{dwconv_forward.1} parent=5 // pred_fallthru
      _
    %p224 = scmp.lt.s32.totalorder %s13, 2
    // Predicated region
    $region37: #{dwconv_forward.1} parent=5 // pred_check
      %p225 = pneg %p224
    $region38: #{dwconv_forward.1} parent=5 // pred_check_branch
      %227 = sbr.rel (%p225) target = $region40
    $region39: #{dwconv_forward.1} parent=5 // pred_region
      // Predicated region
      $region41: #{dwconv_forward.1} parent=39 // pred_check
        %p228 = pneg %p33
      $region42: #{dwconv_forward.1} parent=39 // pred_check_branch
        %230 = sbr.rel (%p228) target = $region44
      $region43: #{dwconv_forward.1} parent=39 // pred_region
        %p231 = scmp.lt.s32.totalorder %s13, 1
        %s232 = scalar_select %p231, %s13, 1
        %s233 = smul.addr %s232, 4
        %s234 = smul.addr %s233, 8
        %s235 = scalar_lea.vmem %s0, %s234
      $region44: #{dwconv_forward.1} parent=39 // pred_fallthru
        _
    $region40: #{dwconv_forward.1} parent=5 // pred_fallthru
      _
    %p236 = scmp.le.s32.totalorder 1, %s13
    %p237 = scmp.lt.s32.totalorder %s13, 3
    %p238 = pnand %p236, %p237
    %p239 = pneg %p238
    // Predicated region
    $region45: #{dwconv_forward.1} parent=5 // pred_check
      _
    $region46: #{dwconv_forward.1} parent=5 // pred_check_branch
      %241 = sbr.rel (%p238) target = $region48
    $region47: #{dwconv_forward.1} parent=5 // pred_region
      %s242 = ssub.s32 %s13, 1
      %p243 = scmp.lt.s32.totalorder %s18, 1
      %s244 = scalar_select %p243, %s18, 1
      %s245 = smul.addr %s244, 4
      %s246 = smul.addr %s245, 8
      %s247 = scalar_lea.vmem %s0, %s246
      %p248 = pneg %p39
      %p249 = pneg %p36
      %p250 = pneg %p60
      %p251 = pneg %p57
      %p252 = pneg %p81
      %p253 = pneg %p78
      %p254 = pneg %p102
      %p255 = pneg %p99
      %p256 = pneg %p123
      %p257 = pneg %p120
      %p258 = pneg %p144
      %p259 = pneg %p141
      %p260 = pneg %p165
      %p261 = pneg %p162
      %p262 = pneg %p191
      %p263 = pneg %p188
      %p264 = scmp.lt.s32.totalorder %s18, 1
      %s265 = scalar_select %p264, %s18, 1
      %s266 = smul.addr %s265, 8
      %s267 = smul.addr %s266, 8
      %s268 = scalar_lea.vmem %s7, %s267
      %p269 = scmp.lt.s32.totalorder %s18, 1
      %s270 = scalar_select %p269, %s18, 1
      %s271 = smul.addr %s270, 4
      %s272 = smul.addr %s271, 8
      %s273 = scalar_lea.vmem %s0, %s272
      %p274 = scmp.lt.s32.totalorder %s18, 1
      %s275 = scalar_select %p274, %s18, 1
      %s276 = smul.addr %s275, 8
      %s277 = smul.addr %s276, 8
      %s278 = scalar_lea.vmem %s7, %s277
      %v279 = vld [vmem:[%s273] sm:$0xff]
      %v280 = vld [vmem:[%s273 + $0x8] sm:$0xff]
      %v281 = vld [vmem:[%s273 + $0x10] sm:$0xff]
      %v282 = vld [vmem:[%s273 + $0x18] sm:$0xff]
      %v283 = vlaneseq
      %v284 = vand.u32 %v283, 127
      %v285 = vadd.s32 %v284, 128
      %v286 = vand.u32 %v284, 15
      %v287 = vand.u32 %v285, 15
      %288 = vrot.lane.b32.xlu0 %v279, 17
      %v289 = vpop.permute.xlu0 %288
      %290 = vrot.lane.b32.xlu0 %v281, 17
      %v291 = vpop.permute.xlu0 %290
      %292 = vrot.lane.b32.xlu0 %v280, 17
      %v293 = vpop.permute.xlu0 %292
      %294 = vrot.lane.b32.xlu0 %v282, 17
      %v295 = vpop.permute.xlu0 %294
      %vm296 = vcmp.lt.s32.totalorder %v284, 17
      %v297 = vsel %vm296, %v289, %v293
      %v298 = vsel %vm296, %v291, %v295
      %v299 = vsel %vm296, %v293, %v289
      %v300 = vsel %vm296, %v295, %v291
      %vm301 = vcmp.ge.s32.totalorder %v284, 16
      %vm302 = vcmp.ge.s32.totalorder %v285, 16
      %vm303 = vcmp.ge.s32.totalorder %v286, 1
      %vm304 = vcmp.ge.s32.totalorder %v287, 1
      %vm305 = vmand %vm301, %vm303
      %vm306 = vmand %vm302, %vm304
      %v307 = vsel %vm305, 1, 0
      %v308 = vsel %vm306, 1, 0
      %vm309 = vcmp.eq.s32.totalorder %v307, 1
      %vm310 = vcmp.eq.s32.totalorder %v308, 1
      %v311 = vsel %vm309, %v299, 0.0
      %v312 = vsel %vm310, %v297, 0.0
      %v313 = vsel %vm309, %v300, 0.0
      %v314 = vsel %vm310, %v298, 0.0
      %v315 = vld [vmem:[%s1] sm:$0xff]
      %v316 = vld [vmem:[%s1 + $0x8] sm:$0xff]
      %318 = vset.pattern.permute.xlu0 0
      %319 = vperm.xlu0 %318, %v315
      %v320 = vpop.permute.xlu0 %319
      %323 = vset.pattern.permute.xlu0 0
      %324 = vperm.xlu0 %323, %v316
      %v325 = vpop.permute.xlu0 %324
      %v327 = vmul.f32 %v311, %v320
      %v328 = vmul.f32 %v312, %v320
      %v329 = vmul.f32 %v313, %v325
      %v330 = vmul.f32 %v314, %v325
      %v331 = vadd.f32 %v327, 0.0
      %v332 = vadd.f32 %v328, 0.0
      %v333 = vadd.f32 %v329, 0.0
      %v334 = vadd.f32 %v330, 0.0
      %335 = vrot.lane.b32.xlu0 %v279, 16
      %v336 = vpop.permute.xlu0 %335
      %337 = vrot.lane.b32.xlu0 %v281, 16
      %v338 = vpop.permute.xlu0 %337
      %339 = vrot.lane.b32.xlu0 %v280, 16
      %v340 = vpop.permute.xlu0 %339
      %341 = vrot.lane.b32.xlu0 %v282, 16
      %v342 = vpop.permute.xlu0 %341
      %vm343 = vcmp.lt.s32.totalorder %v284, 16
      %v344 = vsel %vm343, %v336, %v340
      %v345 = vsel %vm343, %v338, %v342
      %v346 = vsel %vm343, %v340, %v336
      %v347 = vsel %vm343, %v342, %v338
      %v348 = vsel %vm301, 1, 0
      %v349 = vsel %vm302, 1, 0
      %vm350 = vcmp.eq.s32.totalorder %v348, 1
      %vm351 = vcmp.eq.s32.totalorder %v349, 1
      %v352 = vsel %vm350, %v346, 0.0
      %v353 = vsel %vm351, %v344, 0.0
      %v354 = vsel %vm350, %v347, 0.0
      %v355 = vsel %vm351, %v345, 0.0
      %356 = vset.pattern.permute.xlu0 1
      %357 = vperm.xlu0 %356, %v315
      %v358 = vpop.permute.xlu0 %357
      %360 = vset.pattern.permute.xlu0 1
      %361 = vperm.xlu0 %360, %v316
      %v362 = vpop.permute.xlu0 %361
      %v364 = vmul.f32 %v352, %v358
      %v365 = vmul.f32 %v353, %v358
      %v366 = vmul.f32 %v354, %v362
      %v367 = vmul.f32 %v355, %v362
      %v368 = vadd.f32 %v331, %v364
      %v369 = vadd.f32 %v332, %v365
      %v370 = vadd.f32 %v333, %v366
      %v371 = vadd.f32 %v334, %v367
      %372 = vrot.lane.b32.xlu0 %v279, 15
      %v373 = vpop.permute.xlu0 %372
      %374 = vrot.lane.b32.xlu0 %v281, 15
      %v375 = vpop.permute.xlu0 %374
      %376 = vrot.lane.b32.xlu0 %v280, 15
      %v377 = vpop.permute.xlu0 %376
      %378 = vrot.lane.b32.xlu0 %v282, 15
      %v379 = vpop.permute.xlu0 %378
      %vm380 = vcmp.lt.s32.totalorder %v284, 15
      %v381 = vsel %vm380, %v373, %v377
      %v382 = vsel %vm380, %v375, %v379
      %v383 = vsel %vm380, %v377, %v373
      %v384 = vsel %vm380, %v379, %v375
      %vm385 = vcmp.lt.s32.totalorder %v286, 15
      %vm386 = vcmp.lt.s32.totalorder %v287, 15
      %vm387 = vmand %vm301, %vm385
      %vm388 = vmand %vm302, %vm386
      %v389 = vsel %vm387, 1, 0
      %v390 = vsel %vm388, 1, 0
      %vm391 = vcmp.eq.s32.totalorder %v389, 1
      %vm392 = vcmp.eq.s32.totalorder %v390, 1
      %v393 = vsel %vm391, %v383, 0.0
      %v394 = vsel %vm392, %v381, 0.0
      %v395 = vsel %vm391, %v384, 0.0
      %v396 = vsel %vm392, %v382, 0.0
      %397 = vset.pattern.permute.xlu0 2
      %398 = vperm.xlu0 %397, %v315
      %v399 = vpop.permute.xlu0 %398
      %401 = vset.pattern.permute.xlu0 2
      %402 = vperm.xlu0 %401, %v316
      %v403 = vpop.permute.xlu0 %402
      %v405 = vmul.f32 %v393, %v399
      %v406 = vmul.f32 %v394, %v399
      %v407 = vmul.f32 %v395, %v403
      %v408 = vmul.f32 %v396, %v403
      %v409 = vadd.f32 %v368, %v405
      %v410 = vadd.f32 %v369, %v406
      %v411 = vadd.f32 %v370, %v407
      %v412 = vadd.f32 %v371, %v408
      %413 = vrot.lane.b32.xlu0 %v279, 1
      %v414 = vpop.permute.xlu0 %413
      %415 = vrot.lane.b32.xlu0 %v281, 1
      %v416 = vpop.permute.xlu0 %415
      %417 = vrot.lane.b32.xlu0 %v280, 1
      %v418 = vpop.permute.xlu0 %417
      %419 = vrot.lane.b32.xlu0 %v282, 1
      %v420 = vpop.permute.xlu0 %419
      %vm421 = vcmp.lt.s32.totalorder %v284, 1
      %v422 = vsel %vm421, %v414, %v418
      %v423 = vsel %vm421, %v416, %v420
      %v424 = vsel %vm421, %v418, %v414
      %v425 = vsel %vm421, %v420, %v416
      %v426 = vsel %vm303, 1, 0
      %v427 = vsel %vm304, 1, 0
      %vm428 = vcmp.eq.s32.totalorder %v426, 1
      %vm429 = vcmp.eq.s32.totalorder %v427, 1
      %v430 = vsel %vm428, %v424, 0.0
      %v431 = vsel %vm429, %v422, 0.0
      %v432 = vsel %vm428, %v425, 0.0
      %v433 = vsel %vm429, %v423, 0.0
      %434 = vset.pattern.permute.xlu0 3
      %435 = vperm.xlu0 %434, %v315
      %v436 = vpop.permute.xlu0 %435
      %438 = vset.pattern.permute.xlu0 3
      %439 = vperm.xlu0 %438, %v316
      %v440 = vpop.permute.xlu0 %439
      %v442 = vmul.f32 %v430, %v436
      %v443 = vmul.f32 %v431, %v436
      %v444 = vmul.f32 %v432, %v440
      %v445 = vmul.f32 %v433, %v440
      %v446 = vadd.f32 %v409, %v442
      %v447 = vadd.f32 %v410, %v443
      %v448 = vadd.f32 %v411, %v444
      %v449 = vadd.f32 %v412, %v445
      %450 = vset.pattern.permute.xlu0 4
      %451 = vperm.xlu0 %450, %v315
      %v452 = vpop.permute.xlu0 %451
      %454 = vset.pattern.permute.xlu0 4
      %455 = vperm.xlu0 %454, %v316
      %v456 = vpop.permute.xlu0 %455
      %v458 = vmul.f32 %v279, %v452
      %v459 = vmul.f32 %v280, %v452
      %v460 = vmul.f32 %v281, %v456
      %v461 = vmul.f32 %v282, %v456
      %v462 = vadd.f32 %v446, %v458
      %v463 = vadd.f32 %v447, %v459
      %v464 = vadd.f32 %v448, %v460
      %v465 = vadd.f32 %v449, %v461
      %466 = vrot.lane.b32.xlu0 %v279, 127
      %v467 = vpop.permute.xlu0 %466
      %468 = vrot.lane.b32.xlu0 %v281, 127
      %v469 = vpop.permute.xlu0 %468
      %470 = vrot.lane.b32.xlu0 %v280, 127
      %v471 = vpop.permute.xlu0 %470
      %472 = vrot.lane.b32.xlu0 %v282, 127
      %v473 = vpop.permute.xlu0 %472
      %vm474 = vcmp.lt.s32.totalorder %v284, 127
      %v475 = vsel %vm474, %v467, %v471
      %v476 = vsel %vm474, %v469, %v473
      %v477 = vsel %vm474, %v471, %v467
      %v478 = vsel %vm474, %v473, %v469
      %v479 = vsel %vm385, 1, 0
      %v480 = vsel %vm386, 1, 0
      %vm481 = vcmp.eq.s32.totalorder %v479, 1
      %vm482 = vcmp.eq.s32.totalorder %v480, 1
      %v483 = vsel %vm481, %v475, 0.0
      %v484 = vsel %vm482, %v477, 0.0
      %v485 = vsel %vm481, %v476, 0.0
      %v486 = vsel %vm482, %v478, 0.0
      %487 = vset.pattern.permute.xlu0 5
      %488 = vperm.xlu0 %487, %v315
      %v489 = vpop.permute.xlu0 %488
      %491 = vset.pattern.permute.xlu0 5
      %492 = vperm.xlu0 %491, %v316
      %v493 = vpop.permute.xlu0 %492
      %v495 = vmul.f32 %v483, %v489
      %v496 = vmul.f32 %v484, %v489
      %v497 = vmul.f32 %v485, %v493
      %v498 = vmul.f32 %v486, %v493
      %v499 = vadd.f32 %v462, %v495
      %v500 = vadd.f32 %v463, %v496
      %v501 = vadd.f32 %v464, %v497
      %v502 = vadd.f32 %v465, %v498
      %503 = vrot.lane.b32.xlu0 %v279, 113
      %v504 = vpop.permute.xlu0 %503
      %505 = vrot.lane.b32.xlu0 %v281, 113
      %v506 = vpop.permute.xlu0 %505
      %507 = vrot.lane.b32.xlu0 %v280, 113
      %v508 = vpop.permute.xlu0 %507
      %509 = vrot.lane.b32.xlu0 %v282, 113
      %v510 = vpop.permute.xlu0 %509
      %vm511 = vcmp.lt.s32.totalorder %v284, 113
      %v512 = vsel %vm511, %v504, %v508
      %v513 = vsel %vm511, %v506, %v510
      %v514 = vsel %vm511, %v508, %v504
      %v515 = vsel %vm511, %v510, %v506
      %vm516 = vcmp.lt.s32.totalorder %v284, 240
      %vm517 = vcmp.lt.s32.totalorder %v285, 240
      %vm518 = vmand %vm516, %vm303
      %vm519 = vmand %vm517, %vm304
      %v520 = vsel %vm518, 1, 0
      %v521 = vsel %vm519, 1, 0
      %vm522 = vcmp.eq.s32.totalorder %v520, 1
      %vm523 = vcmp.eq.s32.totalorder %v521, 1
      %v524 = vsel %vm522, %v512, 0.0
      %v525 = vsel %vm523, %v514, 0.0
      %v526 = vsel %vm522, %v513, 0.0
      %v527 = vsel %vm523, %v515, 0.0
      %528 = vset.pattern.permute.xlu0 6
      %529 = vperm.xlu0 %528, %v315
      %v530 = vpop.permute.xlu0 %529
      %532 = vset.pattern.permute.xlu0 6
      %533 = vperm.xlu0 %532, %v316
      %v534 = vpop.permute.xlu0 %533
      %v536 = vmul.f32 %v524, %v530
      %v537 = vmul.f32 %v525, %v530
      %v538 = vmul.f32 %v526, %v534
      %v539 = vmul.f32 %v527, %v534
      %v540 = vadd.f32 %v499, %v536
      %v541 = vadd.f32 %v500, %v537
      %v542 = vadd.f32 %v501, %v538
      %v543 = vadd.f32 %v502, %v539
      %544 = vrot.lane.b32.xlu0 %v279, 112
      %v545 = vpop.permute.xlu0 %544
      %546 = vrot.lane.b32.xlu0 %v281, 112
      %v547 = vpop.permute.xlu0 %546
      %548 = vrot.lane.b32.xlu0 %v280, 112
      %v549 = vpop.permute.xlu0 %548
      %550 = vrot.lane.b32.xlu0 %v282, 112
      %v551 = vpop.permute.xlu0 %550
      %vm552 = vcmp.lt.s32.totalorder %v284, 112
      %v553 = vsel %vm552, %v545, %v549
      %v554 = vsel %vm552, %v547, %v551
      %v555 = vsel %vm552, %v549, %v545
      %v556 = vsel %vm552, %v551, %v547
      %v557 = vsel %vm516, 1, 0
      %v558 = vsel %vm517, 1, 0
      %vm559 = vcmp.eq.s32.totalorder %v557, 1
      %vm560 = vcmp.eq.s32.totalorder %v558, 1
      %v561 = vsel %vm559, %v553, 0.0
      %v562 = vsel %vm560, %v555, 0.0
      %v563 = vsel %vm559, %v554, 0.0
      %v564 = vsel %vm560, %v556, 0.0
      %565 = vset.pattern.permute.xlu0 7
      %566 = vperm.xlu0 %565, %v315
      %v567 = vpop.permute.xlu0 %566
      %569 = vset.pattern.permute.xlu0 7
      %570 = vperm.xlu0 %569, %v316
      %v571 = vpop.permute.xlu0 %570
      %v573 = vmul.f32 %v561, %v567
      %v574 = vmul.f32 %v562, %v567
      %v575 = vmul.f32 %v563, %v571
      %v576 = vmul.f32 %v564, %v571
      %v577 = vadd.f32 %v540, %v573
      %v578 = vadd.f32 %v541, %v574
      %v579 = vadd.f32 %v542, %v575
      %v580 = vadd.f32 %v543, %v576
      %581 = vrot.lane.b32.xlu0 %v279, 111
      %v582 = vpop.permute.xlu0 %581
      %583 = vrot.lane.b32.xlu0 %v281, 111
      %v584 = vpop.permute.xlu0 %583
      %585 = vrot.lane.b32.xlu0 %v280, 111
      %v586 = vpop.permute.xlu0 %585
      %587 = vrot.lane.b32.xlu0 %v282, 111
      %v588 = vpop.permute.xlu0 %587
      %vm589 = vcmp.lt.s32.totalorder %v284, 111
      %v590 = vsel %vm589, %v582, %v586
      %v591 = vsel %vm589, %v584, %v588
      %v592 = vsel %vm589, %v586, %v582
      %v593 = vsel %vm589, %v588, %v584
      %vm594 = vmand %vm516, %vm385
      %vm595 = vmand %vm517, %vm386
      %v596 = vsel %vm594, 1, 0
      %v597 = vsel %vm595, 1, 0
      %vm598 = vcmp.eq.s32.totalorder %v596, 1
      %vm599 = vcmp.eq.s32.totalorder %v597, 1
      %v600 = vsel %vm598, %v590, 0.0
      %v601 = vsel %vm599, %v592, 0.0
      %v602 = vsel %vm598, %v591, 0.0
      %v603 = vsel %vm599, %v593, 0.0
      %604 = vset.pattern.permute.xlu0 8
      %605 = vperm.xlu0 %604, %v315
      %v606 = vpop.permute.xlu0 %605
      %608 = vset.pattern.permute.xlu0 8
      %609 = vperm.xlu0 %608, %v316
      %v610 = vpop.permute.xlu0 %609
      %v612 = vmul.f32 %v600, %v606
      %v613 = vmul.f32 %v601, %v606
      %v614 = vmul.f32 %v602, %v610
      %v615 = vmul.f32 %v603, %v610
      %v616 = vadd.f32 %v577, %v612
      %v617 = vadd.f32 %v578, %v613
      %v618 = vadd.f32 %v579, %v614
      %v619 = vadd.f32 %v580, %v615
      %v620 = vld [vmem:[%s2] sm:$0xff]
      %v621 = vld [vmem:[%s2 + $0x8] sm:$0xff]
      %623 = vset.pattern.permute.xlu0 0
      %624 = vperm.xlu0 %623, %v620
      %v625 = vpop.permute.xlu0 %624
      %628 = vset.pattern.permute.xlu0 0
      %629 = vperm.xlu0 %628, %v621
      %v630 = vpop.permute.xlu0 %629
      %v632 = vadd.f32 %v616, %v625
      %v633 = vadd.f32 %v617, %v625
      %v634 = vadd.f32 %v618, %v630
      %v635 = vadd.f32 %v619, %v630
      %v636 = vld [vmem:[%s3] sm:$0xff]
      %v637 = vld [vmem:[%s3 + $0x8] sm:$0xff]
      %v638 = vld [vmem:[%s3 + $0x10] sm:$0xff]
      %v639 = vld [vmem:[%s3 + $0x18] sm:$0xff]
      %v640 = vld [vmem:[%s4] sm:$0xff]
      %v641 = vld [vmem:[%s4 + $0x8] sm:$0xff]
      %v642 = vld [vmem:[%s4 + $0x10] sm:$0xff]
      %v643 = vld [vmem:[%s4 + $0x18] sm:$0xff]
      %645 = vset.pattern.permute.xlu0 0
      %646 = vperm.xlu0 %645, %v640
      %v647 = vpop.permute.xlu0 %646
      %650 = vset.pattern.permute.xlu0 0
      %651 = vperm.xlu0 %650, %v641
      %v652 = vpop.permute.xlu0 %651
      %655 = vset.pattern.permute.xlu0 0
      %656 = vperm.xlu0 %655, %v642
      %v657 = vpop.permute.xlu0 %656
      %660 = vset.pattern.permute.xlu0 0
      %661 = vperm.xlu0 %660, %v643
      %v662 = vpop.permute.xlu0 %661
      %vm664 = vcmask 130048
      %v666 = vsel %vm664, %v636, 0
      %v669 = vsel %vm664, %v637, 0
      %v672 = vsel %vm664, %v638, 0
      %v675 = vsel %vm664, %v639, 0
      %677 = vmatpush.msra.mxu0 0.0
      %678 = vmatpush.msra.mxu0 0.0
      %679 = vmatpush.msra.mxu0 0.0
      %680 = vmatpush.msra.mxu0 0.0
      %681 = vmatpush.msra.mxu0 0.0
      %682 = vmatpush.msra.mxu0 0.0
      %683 = vmatpush.msra.mxu0 0.0
      %684 = vmatpush.msra.mxu0 0.0
      %685 = vmatpush.msra.mxu0 0.0
      %686 = vmatpush.msra.mxu0 0.0
      %687 = vmatpush.msra.mxu0 0.0
      %688 = vmatpush.msra.mxu0 0.0
      %689 = vmatpush.msra.mxu0 0.0
      %690 = vmatpush.msra.mxu0 0.0
      %691 = vmatpush.msra.mxu0 %v634
      %692 = vmatpush.msra.mxu0 %v632
      %693 = vmatmul.f32.gmra.mxu0 %v666
      %v694 = vpop.f32.mrf.mxu0
      %v695 = vadd.f32 %v647, %v694
      %696 = vmatmul.f32.gmra.mxu0 %v669
      %v697 = vpop.f32.mrf.mxu0
      %v698 = vadd.f32 %v652, %v697
      %699 = vmatmul.f32.gmra.mxu0 %v672
      %v700 = vpop.f32.mrf.mxu0
      %v701 = vadd.f32 %v657, %v700
      %702 = vmatmul.f32.gmra.mxu0 %v675
      %v703 = vpop.f32.mrf.mxu0
      %v704 = vadd.f32 %v662, %v703
      %705 = vdwg.mxu0
      %706 = vmatpush.msra.mxu0 0.0
      %707 = vmatpush.msra.mxu0 0.0
      %708 = vmatpush.msra.mxu0 0.0
      %709 = vmatpush.msra.mxu0 0.0
      %710 = vmatpush.msra.mxu0 0.0
      %711 = vmatpush.msra.mxu0 0.0
      %712 = vmatpush.msra.mxu0 0.0
      %713 = vmatpush.msra.mxu0 0.0
      %714 = vmatpush.msra.mxu0 0.0
      %715 = vmatpush.msra.mxu0 0.0
      %716 = vmatpush.msra.mxu0 0.0
      %717 = vmatpush.msra.mxu0 0.0
      %718 = vmatpush.msra.mxu0 0.0
      %719 = vmatpush.msra.mxu0 0.0
      %720 = vmatpush.msra.mxu0 %v635
      %721 = vmatpush.msra.mxu0 %v633
      %722 = vmatmul.f32.gmra.mxu0 %v666
      %v723 = vpop.f32.mrf.mxu0
      %v724 = vadd.f32 %v647, %v723
      %725 = vmatmul.f32.gmra.mxu0 %v669
      %v726 = vpop.f32.mrf.mxu0
      %v727 = vadd.f32 %v652, %v726
      %728 = vmatmul.f32.gmra.mxu0 %v672
      %v729 = vpop.f32.mrf.mxu0
      %v730 = vadd.f32 %v657, %v729
      %731 = vmatmul.f32.gmra.mxu0 %v675
      %v732 = vpop.f32.mrf.mxu0
      %v733 = vadd.f32 %v662, %v732
      %734 = vdwg.mxu0
      %v735 = vadd.f32 %v695, %v698
      %v736 = vadd.f32 %v735, %v701
      %v737 = vadd.f32 %v736, %v704
      %v738 = vrot.slane %v737, 4
      %v739 = vadd.f32 %v737, %v738
      %v740 = vrot.slane %v739, 2
      %v741 = vadd.f32 %v739, %v740
      %v742 = vrot.slane %v741, 1
      %v743 = vadd.f32 %v741, %v742
      %v744 = vadd.f32 %v724, %v727
      %v745 = vadd.f32 %v744, %v730
      %v746 = vadd.f32 %v745, %v733
      %v747 = vrot.slane %v746, 4
      %v748 = vadd.f32 %v746, %v747
      %v749 = vrot.slane %v748, 2
      %v750 = vadd.f32 %v748, %v749
      %v751 = vrot.slane %v750, 1
      %v752 = vadd.f32 %v750, %v751
      %v753 = vrcp.pop 32.0
      %v754 = vmul.f32 32.0, %v753
      %v755 = vsub.f32 1.0, %v754
      %v756 = vmul.f32 %v753, %v755
      %v757 = vadd.f32 %v753, %v756
      %vm758 = vweird.f32 %v753
      %v759 = vsel %vm758, %v753, %v757
      %v760 = vmul.f32 %v743, %v759
      %v761 = vmul.f32 %v752, %v759
      %v762 = vsub.f32 %v695, %v760
      %v763 = vsub.f32 %v724, %v761
      %v764 = vsub.f32 %v698, %v760
      %v765 = vsub.f32 %v727, %v761
      %v766 = vsub.f32 %v701, %v760
      %v767 = vsub.f32 %v730, %v761
      %v768 = vsub.f32 %v704, %v760
      %v769 = vsub.f32 %v733, %v761
      %v770 = vmul.f32 %v762, %v762
      %v771 = vmul.f32 %v763, %v763
      %v772 = vmul.f32 %v764, %v764
      %v773 = vmul.f32 %v765, %v765
      %v774 = vmul.f32 %v766, %v766
      %v775 = vmul.f32 %v767, %v767
      %v776 = vmul.f32 %v768, %v768
      %v777 = vmul.f32 %v769, %v769
      %v778 = vadd.f32 %v770, %v772
      %v779 = vadd.f32 %v778, %v774
      %v780 = vadd.f32 %v779, %v776
      %v781 = vrot.slane %v780, 4
      %v782 = vadd.f32 %v780, %v781
      %v783 = vrot.slane %v782, 2
      %v784 = vadd.f32 %v782, %v783
      %v785 = vrot.slane %v784, 1
      %v786 = vadd.f32 %v784, %v785
      %v787 = vadd.f32 %v771, %v773
      %v788 = vadd.f32 %v787, %v775
      %v789 = vadd.f32 %v788, %v777
      %v790 = vrot.slane %v789, 4
      %v791 = vadd.f32 %v789, %v790
      %v792 = vrot.slane %v791, 2
      %v793 = vadd.f32 %v791, %v792
      %v794 = vrot.slane %v793, 1
      %v795 = vadd.f32 %v793, %v794
      %v796 = vmul.f32 %v786, %v759
      %v797 = vmul.f32 %v795, %v759
      %v798 = vadd.f32 %v796, 1e-06
      %v799 = vadd.f32 %v797, 1e-06
      %v800 = vrsqrt.pop %v798
      %v801 = vmul.f32 %v800, %v798
      %v802 = vmul.f32 %v801, %v800
      %v803 = vmul.f32 0.5, %v802
      %v804 = vsub.f32 1.5, %v803
      %v805 = vmul.f32 %v800, %v804
      %vm806 = vweird.f32 %v798
      %vm807 = vweird.f32 %v800
      %vm808 = vmor %vm806, %vm807
      %v809 = vsel %vm808, %v800, %v805
      %v810 = vrsqrt.pop %v799
      %v811 = vmul.f32 %v810, %v799
      %v812 = vmul.f32 %v811, %v810
      %v813 = vmul.f32 0.5, %v812
      %v814 = vsub.f32 1.5, %v813
      %v815 = vmul.f32 %v810, %v814
      %vm816 = vweird.f32 %v799
      %vm817 = vweird.f32 %v810
      %vm818 = vmor %vm816, %vm817
      %v819 = vsel %vm818, %v810, %v815
      %v820 = vmul.f32 %v762, %v809
      %v821 = vmul.f32 %v763, %v819
      %v822 = vmul.f32 %v764, %v809
      %v823 = vmul.f32 %v765, %v819
      %v824 = vmul.f32 %v766, %v809
      %v825 = vmul.f32 %v767, %v819
      %v826 = vmul.f32 %v768, %v809
      %v827 = vmul.f32 %v769, %v819
      %v828 = vld [vmem:[%s5] sm:$0xff]
      %v829 = vld [vmem:[%s5 + $0x8] sm:$0xff]
      %v830 = vld [vmem:[%s5 + $0x10] sm:$0xff]
      %v831 = vld [vmem:[%s5 + $0x18] sm:$0xff]
      %833 = vset.pattern.permute.xlu0 0
      %834 = vperm.xlu0 %833, %v828
      %v835 = vpop.permute.xlu0 %834
      %838 = vset.pattern.permute.xlu0 0
      %839 = vperm.xlu0 %838, %v829
      %v840 = vpop.permute.xlu0 %839
      %843 = vset.pattern.permute.xlu0 0
      %844 = vperm.xlu0 %843, %v830
      %v845 = vpop.permute.xlu0 %844
      %848 = vset.pattern.permute.xlu0 0
      %849 = vperm.xlu0 %848, %v831
      %v850 = vpop.permute.xlu0 %849
      %v852 = vmul.f32 %v820, %v835
      %v853 = vmul.f32 %v821, %v835
      %v854 = vmul.f32 %v822, %v840
      %v855 = vmul.f32 %v823, %v840
      %v856 = vmul.f32 %v824, %v845
      %v857 = vmul.f32 %v825, %v845
      %v858 = vmul.f32 %v826, %v850
      %v859 = vmul.f32 %v827, %v850
      %v860 = vld [vmem:[%s6] sm:$0xff]
      %v861 = vld [vmem:[%s6 + $0x8] sm:$0xff]
      %v862 = vld [vmem:[%s6 + $0x10] sm:$0xff]
      %v863 = vld [vmem:[%s6 + $0x18] sm:$0xff]
      %865 = vset.pattern.permute.xlu0 0
      %866 = vperm.xlu0 %865, %v860
      %v867 = vpop.permute.xlu0 %866
      %870 = vset.pattern.permute.xlu0 0
      %871 = vperm.xlu0 %870, %v861
      %v872 = vpop.permute.xlu0 %871
      %875 = vset.pattern.permute.xlu0 0
      %876 = vperm.xlu0 %875, %v862
      %v877 = vpop.permute.xlu0 %876
      %880 = vset.pattern.permute.xlu0 0
      %881 = vperm.xlu0 %880, %v863
      %v882 = vpop.permute.xlu0 %881
      %v884 = vadd.f32 %v852, %v867
      %v885 = vadd.f32 %v853, %v867
      %v886 = vadd.f32 %v854, %v872
      %v887 = vadd.f32 %v855, %v872
      %v888 = vadd.f32 %v856, %v877
      %v889 = vadd.f32 %v857, %v877
      %v890 = vadd.f32 %v858, %v882
      %v891 = vadd.f32 %v859, %v882
      %v892 = vsub.f32 0.0, %v884
      %v893 = vsub.f32 0.0, %v885
      %v894 = vsub.f32 0.0, %v886
      %v895 = vsub.f32 0.0, %v887
      %v896 = vsub.f32 0.0, %v888
      %v897 = vsub.f32 0.0, %v889
      %v898 = vsub.f32 0.0, %v890
      %v899 = vsub.f32 0.0, %v891
      %v900 = vmul.f32 %v892, 1.442695
      %v901 = vpow.pop %v900
      %v902 = vmul.f32 %v893, 1.442695
      %v903 = vpow.pop %v902
      %v904 = vmul.f32 %v894, 1.442695
      %v905 = vpow.pop %v904
      %v906 = vmul.f32 %v895, 1.442695
      %v907 = vpow.pop %v906
      %v908 = vmul.f32 %v896, 1.442695
      %v909 = vpow.pop %v908
      %v910 = vmul.f32 %v897, 1.442695
      %v911 = vpow.pop %v910
      %v912 = vmul.f32 %v898, 1.442695
      %v913 = vpow.pop %v912
      %v914 = vmul.f32 %v899, 1.442695
      %v915 = vpow.pop %v914
      %v916 = vadd.f32 %v901, 1.0
      %v917 = vadd.f32 %v903, 1.0
      %v918 = vadd.f32 %v905, 1.0
      %v919 = vadd.f32 %v907, 1.0
      %v920 = vadd.f32 %v909, 1.0
      %v921 = vadd.f32 %v911, 1.0
      %v922 = vadd.f32 %v913, 1.0
      %v923 = vadd.f32 %v915, 1.0
      %v924 = vrcp.pop %v916
      %v925 = vmul.f32 %v916, %v924
      %v926 = vsub.f32 1.0, %v925
      %v927 = vmul.f32 %v924, %v926
      %v928 = vadd.f32 %v924, %v927
      %vm929 = vweird.f32 %v916
      %vm930 = vweird.f32 %v924
      %vm931 = vmor %vm929, %vm930
      %v932 = vsel %vm931, %v924, %v928
      %v933 = vand.u32 2147483647, %v916
      %vm934 = vcmp.eq.f32.partialorder %v933, 8.507059e+37
      %v935 = vand.u32 %v916, 2147483648
      %v936 = vor.u32 1.1754944e-38, %v935
      %v937 = vsel %vm934, %v936, %v932
      %v938 = vmul.f32 %v884, %v937
      %v939 = vrcp.pop %v917
      %v940 = vmul.f32 %v917, %v939
      %v941 = vsub.f32 1.0, %v940
      %v942 = vmul.f32 %v939, %v941
      %v943 = vadd.f32 %v939, %v942
      %vm944 = vweird.f32 %v917
      %vm945 = vweird.f32 %v939
      %vm946 = vmor %vm944, %vm945
      %v947 = vsel %vm946, %v939, %v943
      %v948 = vand.u32 2147483647, %v917
      %vm949 = vcmp.eq.f32.partialorder %v948, 8.507059e+37
      %v950 = vand.u32 %v917, 2147483648
      %v951 = vor.u32 1.1754944e-38, %v950
      %v952 = vsel %vm949, %v951, %v947
      %v953 = vmul.f32 %v885, %v952
      %v954 = vrcp.pop %v918
      %v955 = vmul.f32 %v918, %v954
      %v956 = vsub.f32 1.0, %v955
      %v957 = vmul.f32 %v954, %v956
      %v958 = vadd.f32 %v954, %v957
      %vm959 = vweird.f32 %v918
      %vm960 = vweird.f32 %v954
      %vm961 = vmor %vm959, %vm960
      %v962 = vsel %vm961, %v954, %v958
      %v963 = vand.u32 2147483647, %v918
      %vm964 = vcmp.eq.f32.partialorder %v963, 8.507059e+37
      %v965 = vand.u32 %v918, 2147483648
      %v966 = vor.u32 1.1754944e-38, %v965
      %v967 = vsel %vm964, %v966, %v962
      %v968 = vmul.f32 %v886, %v967
      %v969 = vrcp.pop %v919
      %v970 = vmul.f32 %v919, %v969
      %v971 = vsub.f32 1.0, %v970
      %v972 = vmul.f32 %v969, %v971
      %v973 = vadd.f32 %v969, %v972
      %vm974 = vweird.f32 %v919
      %vm975 = vweird.f32 %v969
      %vm976 = vmor %vm974, %vm975
      %v977 = vsel %vm976, %v969, %v973
      %v978 = vand.u32 2147483647, %v919
      %vm979 = vcmp.eq.f32.partialorder %v978, 8.507059e+37
      %v980 = vand.u32 %v919, 2147483648
      %v981 = vor.u32 1.1754944e-38, %v980
      %v982 = vsel %vm979, %v981, %v977
      %v983 = vmul.f32 %v887, %v982
      %v984 = vrcp.pop %v920
      %v985 = vmul.f32 %v920, %v984
      %v986 = vsub.f32 1.0, %v985
      %v987 = vmul.f32 %v984, %v986
      %v988 = vadd.f32 %v984, %v987
      %vm989 = vweird.f32 %v920
      %vm990 = vweird.f32 %v984
      %vm991 = vmor %vm989, %vm990
      %v992 = vsel %vm991, %v984, %v988
      %v993 = vand.u32 2147483647, %v920
      %vm994 = vcmp.eq.f32.partialorder %v993, 8.507059e+37
      %v995 = vand.u32 %v920, 2147483648
      %v996 = vor.u32 1.1754944e-38, %v995
      %v997 = vsel %vm994, %v996, %v992
      %v998 = vmul.f32 %v888, %v997
      %v999 = vrcp.pop %v921
      %v1000 = vmul.f32 %v921, %v999
      %v1001 = vsub.f32 1.0, %v1000
      %v1002 = vmul.f32 %v999, %v1001
      %v1003 = vadd.f32 %v999, %v1002
      %vm1004 = vweird.f32 %v921
      %vm1005 = vweird.f32 %v999
      %vm1006 = vmor %vm1004, %vm1005
      %v1007 = vsel %vm1006, %v999, %v1003
      %v1008 = vand.u32 2147483647, %v921
      %vm1009 = vcmp.eq.f32.partialorder %v1008, 8.507059e+37
      %v1010 = vand.u32 %v921, 2147483648
      %v1011 = vor.u32 1.1754944e-38, %v1010
      %v1012 = vsel %vm1009, %v1011, %v1007
      %v1013 = vmul.f32 %v889, %v1012
      %v1014 = vrcp.pop %v922
      %v1015 = vmul.f32 %v922, %v1014
      %v1016 = vsub.f32 1.0, %v1015
      %v1017 = vmul.f32 %v1014, %v1016
      %v1018 = vadd.f32 %v1014, %v1017
      %vm1019 = vweird.f32 %v922
      %vm1020 = vweird.f32 %v1014
      %vm1021 = vmor %vm1019, %vm1020
      %v1022 = vsel %vm1021, %v1014, %v1018
      %v1023 = vand.u32 2147483647, %v922
      %vm1024 = vcmp.eq.f32.partialorder %v1023, 8.507059e+37
      %v1025 = vand.u32 %v922, 2147483648
      %v1026 = vor.u32 1.1754944e-38, %v1025
      %v1027 = vsel %vm1024, %v1026, %v1022
      %v1028 = vmul.f32 %v890, %v1027
      %v1029 = vrcp.pop %v923
      %v1030 = vmul.f32 %v923, %v1029
      %v1031 = vsub.f32 1.0, %v1030
      %v1032 = vmul.f32 %v1029, %v1031
      %v1033 = vadd.f32 %v1029, %v1032
      %vm1034 = vweird.f32 %v923
      %vm1035 = vweird.f32 %v1029
      %vm1036 = vmor %vm1034, %vm1035
      %v1037 = vsel %vm1036, %v1029, %v1033
      %v1038 = vand.u32 2147483647, %v923
      %vm1039 = vcmp.eq.f32.partialorder %v1038, 8.507059e+37
      %v1040 = vand.u32 %v923, 2147483648
      %v1041 = vor.u32 1.1754944e-38, %v1040
      %v1042 = vsel %vm1039, %v1041, %v1037
      %v1043 = vmul.f32 %v891, %v1042
      %1044 = vst [vmem:[%s278] sm:$0xff] %v938
      %1045 = vst [vmem:[%s278 + $0x8] sm:$0xff] %v953
      %1046 = vst [vmem:[%s278 + $0x10] sm:$0xff] %v968
      %1047 = vst [vmem:[%s278 + $0x18] sm:$0xff] %v983
      %1048 = vst [vmem:[%s278 + $0x20] sm:$0xff] %v998
      %1049 = vst [vmem:[%s278 + $0x28] sm:$0xff] %v1013
      %1050 = vst [vmem:[%s278 + $0x30] sm:$0xff] %v1028
      %1051 = vst [vmem:[%s278 + $0x38] sm:$0xff] %v1043
      %p1052 = scmp.lt.s32.totalorder %s18, 1
      %s1053 = scalar_select %p1052, %s18, 1
      %s1054 = smul.addr %s1053, 8
      %s1055 = smul.addr %s1054, 8
      %s1056 = scalar_lea.vmem %s7, %s1055
      // Predicated region
      $region49: #{dwconv_forward.1} parent=47 // pred_check
        %p1057 = pneg %p188
      $region50: #{dwconv_forward.1} parent=47 // pred_check_branch
        %1059 = sbr.rel (%p1057) target = $region52
      $region51: #{dwconv_forward.1} parent=47 // pred_region
        _
      $region52: #{dwconv_forward.1} parent=47 // pred_fallthru
        _
    $region48: #{dwconv_forward.1} parent=5 // pred_fallthru
      _
    %p1060 = scmp.le.s32.totalorder 2, %s13
    // Predicated region
    $region53: #{dwconv_forward.1} parent=5 // pred_check
      %p1061 = pneg %p1060
    $region54: #{dwconv_forward.1} parent=5 // pred_check_branch
      %1063 = sbr.rel (%p1061) target = $region56
    $region55: #{dwconv_forward.1} parent=5 // pred_region
      %s1064 = ssub.s32 %s13, 2
      // Predicated region
      $region57: #{dwconv_forward.1} parent=55 // pred_check
        %p1065 = pneg %p194
      $region58: #{dwconv_forward.1} parent=55 // pred_check_branch
        %1067 = sbr.rel (%p1065) target = $region60
      $region59: #{dwconv_forward.1} parent=55 // pred_region
        %p1068 = scmp.lt.s32.totalorder %s19, 1
        %s1069 = scalar_select %p1068, %s19, 1
        %s1070 = smul.addr %s1069, 8
        %s1071 = smul.addr %s1070, 8
        %s1072 = scalar_lea.vmem %s7, %s1071
      $region60: #{dwconv_forward.1} parent=55 // pred_fallthru
        _
    $region56: #{dwconv_forward.1} parent=5 // pred_fallthru
      _
  $region6: #{dwconv_forward.1} parent=0 // loop_footer
    %s17 = sadd.s32 1, %s13
  $region7: #{dwconv_forward.1} parent=0 // loop_footer_branch
    %12 = sbr.rel target = $region3
  $region8: #{dwconv_forward.1} parent=0 // loop_exit
    _

</llo_original>
